<compile_context>
chip_gen: v7x
topology: tpu7x:2x2x1
jax: 0.10.0
libtpu: 0.0.40
codegen_flags: <defaults>
</compile_context>

<pallas_src>
import jax
import jax.numpy as jnp
from jax.experimental import pallas as pl
from jax.experimental.pallas import tpu as pltpu

HIDDEN_SIZE = 32  # matches the `hidden_size = 32` global in the source script


def mlp_kernel(x_ref, packed_ref, w2_ref, o_ref):
    # x_ref:      (1, TB)  f32 lane-dense batch tile
    # packed_ref: (H, 8)   f32, columns = [w1 | b1 | b2 | w3 | b3 (row 0) | pad]
    # w2_ref:     (H, H)   bf16 middle-layer weight (MXU-native)
    # o_ref:      (1, TB)  f32 lane-dense output tile
    x = x_ref[...]                                            # (1, TB)
    p = packed_ref[...]                                       # (H, 8)
    w1 = p[:, 0:1]                                            # (H, 1)
    b1 = p[:, 1:2]
    b2 = p[:, 2:3]
    w3 = p[:, 3:4]
    b3 = p[0:1, 4:5]                                          # (1, 1) scalar bias

    # Layer 1 (fan-in = 1): rank-1 outer product on the VPU, no MXU pass.
    h = jnp.maximum(w1 * x + b1, 0.0)                         # (H, TB) f32

    # Layer 2: (H, H) @ (H, TB) on the MXU, bf16 inputs + f32 accumulation.
    h = jnp.dot(w2_ref[...], h.astype(jnp.bfloat16),
                preferred_element_type=jnp.float32) + b2      # (H, TB) f32
    h = jnp.maximum(h, 0.0)

    # Layer 3 (fan-out = 1): VPU multiply + sublane (XLU) reduction.
    o = jnp.sum(w3 * h, axis=0, keepdims=True) + b3           # (1, TB)
    o_ref[...] = o.astype(o_ref.dtype)


def _choose_tiling(n, cap):
    """Tile sized from N (bounds padding) with >=2 steps once there is real work."""
    n_up = pl.cdiv(n, 128) * 128
    # Small-N latency path stays single-step; larger N gets >=2 steps so the
    # "parallel" batch axis can shard across v7x's two TensorCores.
    min_steps = 1 if n_up <= 2048 else 2
    steps = max(min_steps, pl.cdiv(n_up, cap))
    tile = pl.cdiv(pl.cdiv(n, steps), 128) * 128              # <= cap by construction
    return tile, steps


def net_forward(x, params, *, tb=32768):
    """Forward pass matching Net.forward. x may be (N,) or (N, 1). Returns (N, 1)."""
    if x.ndim == 2 and x.shape[1] == 1:
        x = x[:, 0]
    x = x.astype(jnp.float32)
    N = x.shape[0]

    # Params kept in PyTorch layout: W (out_features, in_features), b (out,).
    W1, B1, W2, B2, W3, B3 = params
    H = W2.shape[0]

    # Pack the five tiny params into one (H, 8) resident block (single DMA).
    packed = jnp.zeros((H, 8), jnp.float32)
    packed = packed.at[:, 0].set(W1.reshape(H).astype(jnp.float32))
    packed = packed.at[:, 1].set(B1.reshape(H).astype(jnp.float32))
    packed = packed.at[:, 2].set(B2.reshape(H).astype(jnp.float32))
    packed = packed.at[:, 3].set(W3.reshape(H).astype(jnp.float32))
    packed = packed.at[0, 4].set(B3.reshape(()).astype(jnp.float32))
    w2 = W2.astype(jnp.bfloat16)      # MXU-native inputs; f32 accumulation in-kernel

    cap = max(128, (int(tb) // 128) * 128)
    tile, steps = _choose_tiling(N, cap)
    n_pad = tile * steps

    x_row = jnp.pad(x, (0, n_pad - N)).reshape(1, n_pad)

    # Per-step VMEM: double-buffered x/out rows (~16 B/sample) plus ~3 H-wide
    # f32/bf16 intermediates (~10*H B/sample); cap at 48 MiB for v7x.
    vmem_est = tile * (16 + 10 * H) + (1 << 20)
    vmem_limit = int(min(48 << 20, max(32 << 20, vmem_est)))

    flops = int(n_pad * (2 * H * H + 4 * H))
    bytes_accessed = int(8 * n_pad + H * H * 2 + H * 8 * 4)

    out_row = pl.pallas_call(
        mlp_kernel,
        out_shape=jax.ShapeDtypeStruct((1, n_pad), jnp.float32),
        grid=(steps,),
        in_specs=[
            pl.BlockSpec((1, tile), lambda i: (0, i)),   # x: lane-dense batch tile
            pl.BlockSpec((H, 8), lambda i: (0, 0)),      # packed small params, resident
            pl.BlockSpec((H, H), lambda i: (0, 0)),      # W2 (bf16), resident
        ],
        out_specs=pl.BlockSpec((1, tile), lambda i: (0, i)),  # lane-dense output tile
        compiler_params=pltpu.CompilerParams(
            dimension_semantics=("parallel",),           # shards batch over TCs (v7x)
            vmem_limit_bytes=vmem_limit,
        ),
        cost_estimate=pl.CostEstimate(
            flops=flops, transcendentals=0, bytes_accessed=bytes_accessed),
    )(x_row, packed, w2)

    return out_row[0, :N][:, None]                       # back to (N, 1)


def init_params(key, hidden_size=HIDDEN_SIZE):
    """Deterministic init mimicking torch.nn.Linear's U(-1/sqrt(fan_in), +) init."""
    k1, k2, k3, k4, k5, k6 = jax.random.split(key, 6)

    def lin(kw, kb, fan_in, fan_out):
        bound = 1.0 / float(fan_in) ** 0.5
        w = jax.random.uniform(kw, (fan_out, fan_in), jnp.float32, -bound, bound)
        b = jax.random.uniform(kb, (fan_out,), jnp.float32, -bound, bound)
        return w, b

    W1, B1 = lin(k1, k2, 1, hidden_size)             # self.hidden
    W2, B2 = lin(k3, k4, hidden_size, hidden_size)   # self.hidden_mid
    W3, B3 = lin(k5, k6, hidden_size, 1)             # self.output
    return (W1, B1, W2, B2, W3, B3)


def reference_forward_f32(x, params):
    """Pure-f32 reference of Net.forward."""
    if x.ndim == 1:
        x = x[:, None]
    W1, B1, W2, B2, W3, B3 = params
    hi = jax.lax.Precision.HIGHEST
    h = jnp.maximum(jnp.dot(x, W1.T, precision=hi) + B1, 0.0)
    h = jnp.maximum(jnp.dot(h, W2.T, precision=hi) + B2, 0.0)
    return jnp.dot(h, W3.T, precision=hi) + B3


def reference_forward_bf16mid(x, params):
    """Reference that mirrors the kernel's bf16-input / f32-accum middle matmul."""
    if x.ndim == 1:
        x = x[:, None]
    W1, B1, W2, B2, W3, B3 = params
    hi = jax.lax.Precision.HIGHEST
    h = jnp.maximum(jnp.dot(x, W1.T, precision=hi) + B1, 0.0)
    h = h.astype(jnp.bfloat16).astype(jnp.float32)
    w2 = W2.astype(jnp.bfloat16).astype(jnp.float32)
    h = jnp.maximum(jnp.dot(h, w2.T, precision=hi) + B2, 0.0)
    return jnp.dot(h, W3.T, precision=hi) + B3


if __name__ == "__main__":
    key = jax.random.PRNGKey(0)
    kx, kp, kx2 = jax.random.split(key, 3)

    params = init_params(kp, HIDDEN_SIZE)

    # Small batch of scalar samples (points on a sine curve); not a multiple of 128.
    N = 300
    x = jax.random.uniform(kx, (N,), jnp.float32, -3.14159, 3.14159)
    ref_f32 = reference_forward_f32(x, params)
    ref_bf16 = reference_forward_bf16mid(x, params)

    # Default (large-tile) path: single grid step for this N.
    out = jax.block_until_ready(net_forward(x, params))
    assert out.shape == (N, 1)
    assert jnp.allclose(out, ref_bf16, atol=1e-4, rtol=1e-4)   # matches kernel semantics
    assert jnp.allclose(out, ref_f32, atol=5e-2, rtol=5e-2)    # bf16 MXU inputs -> loose

    # Tiny tile cap: exercises the multi-step "parallel" grid plus pad/unpad.
    out2 = jax.block_until_ready(net_forward(x, params, tb=128))
    assert out2.shape == (N, 1)
    assert jnp.allclose(out2, ref_bf16, atol=1e-4, rtol=1e-4)

    # Larger N: forces >=2 grid steps (v7x dual-TensorCore sharding path).
    N2 = 2600
    x2 = jax.random.uniform(kx2, (N2,), jnp.float32, -3.14159, 3.14159)
    out3 = jax.block_until_ready(net_forward(x2, params))
    assert out3.shape == (N2, 1)
    assert jnp.allclose(out3, reference_forward_bf16mid(x2, params), atol=1e-4, rtol=1e-4)

    print("KERNEL_OK")
</pallas_src>

<mosaic_0001>
module attributes {stable_mosaic.version = 11 : i64} {
  func.func @mlp_kernel(%arg0: i32, %arg1: memref<1x384xf32, #tpu.memory_space<vmem>>, %arg2: memref<32x8xf32, #tpu.memory_space<vmem>>, %arg3: memref<32x32xbf16, #tpu.memory_space<vmem>>, %arg4: memref<1x384xf32, #tpu.memory_space<vmem>>) attributes {dimension_semantics = [#tpu.dimension_semantics<parallel>], iteration_bounds = array<i64: 1>, scalar_prefetch = 0 : i64, scratch_operands = 0 : i64, tpu.core_type = #tpu.core_type<tc>, window_params = [{transform_indices = @transform_0, window_bounds = array<i64: 1, 384>}, {pipeline_mode = #tpu.pipeline_mode<synchronous>, transform_indices = @transform_1, window_bounds = array<i64: 32, 8>}, {pipeline_mode = #tpu.pipeline_mode<synchronous>, transform_indices = @transform_2, window_bounds = array<i64: 32, 32>}, {transform_indices = @transform_3, window_bounds = array<i64: 1, 384>}]} {
    %c0 = arith.constant 0 : index
    %c0_0 = arith.constant 0 : index
    %0 = vector.load %arg1[%c0, %c0_0] : memref<1x384xf32, #tpu.memory_space<vmem>>, vector<1x384xf32>
    %c0_1 = arith.constant 0 : index
    %c0_2 = arith.constant 0 : index
    %1 = vector.load %arg2[%c0_1, %c0_2] : memref<32x8xf32, #tpu.memory_space<vmem>>, vector<32x8xf32>
    %2 = vector.extract_strided_slice %1 {offsets = [0, 0], sizes = [32, 1], strides = [1, 1]} : vector<32x8xf32> to vector<32x1xf32>
    %3 = vector.extract_strided_slice %1 {offsets = [0, 1], sizes = [32, 1], strides = [1, 1]} : vector<32x8xf32> to vector<32x1xf32>
    %4 = vector.extract_strided_slice %1 {offsets = [0, 2], sizes = [32, 1], strides = [1, 1]} : vector<32x8xf32> to vector<32x1xf32>
    %5 = vector.extract_strided_slice %1 {offsets = [0, 3], sizes = [32, 1], strides = [1, 1]} : vector<32x8xf32> to vector<32x1xf32>
    %6 = vector.extract_strided_slice %1 {offsets = [0, 4], sizes = [1, 1], strides = [1, 1]} : vector<32x8xf32> to vector<1x1xf32>
    %7 = vector.broadcast %2 : vector<32x1xf32> to vector<32x384xf32>
    %8 = vector.broadcast %0 : vector<1x384xf32> to vector<32x384xf32>
    %9 = arith.mulf %7, %8 : vector<32x384xf32>
    %10 = vector.broadcast %3 : vector<32x1xf32> to vector<32x384xf32>
    %11 = arith.addf %9, %10 : vector<32x384xf32>
    %cst = arith.constant 0.000000e+00 : f32
    %12 = vector.broadcast %cst : f32 to vector<32x384xf32>
    %13 = arith.maximumf %11, %12 : vector<32x384xf32>
    %c0_3 = arith.constant 0 : index
    %c0_4 = arith.constant 0 : index
    %14 = vector.load %arg3[%c0_3, %c0_4] : memref<32x32xbf16, #tpu.memory_space<vmem>>, vector<32x32xbf16>
    %15 = arith.truncf %13 : vector<32x384xf32> to vector<32x384xbf16>
    %cst_5 = arith.constant dense<0.000000e+00> : vector<32x384xf32>
    %16 = tpu.matmul %14, %15, %cst_5 {dimension_numbers = #tpu.dot_dimension_numbers<[1], [0], [0], [1], [0, 0, 1, 1], [], []>} : vector<32x32xbf16>, vector<32x384xbf16>, vector<32x384xf32> -> vector<32x384xf32>
    %17 = vector.broadcast %4 : vector<32x1xf32> to vector<32x384xf32>
    %18 = arith.addf %16, %17 : vector<32x384xf32>
    %cst_6 = arith.constant 0.000000e+00 : f32
    %19 = vector.broadcast %cst_6 : f32 to vector<32x384xf32>
    %20 = arith.maximumf %18, %19 : vector<32x384xf32>
    %21 = vector.broadcast %5 : vector<32x1xf32> to vector<32x384xf32>
    %22 = arith.mulf %21, %20 : vector<32x384xf32>
    %cst_7 = arith.constant dense<0.000000e+00> : vector<384xf32>
    %23 = vector.multi_reduction <add>, %22, %cst_7 [0] : vector<32x384xf32> to vector<384xf32>
    %24 = vector.shape_cast %23 : vector<384xf32> to vector<1x384xf32>
    %25 = vector.broadcast %6 : vector<1x1xf32> to vector<1x384xf32>
    %26 = arith.addf %24, %25 : vector<1x384xf32>
    %c0_8 = arith.constant 0 : index
    %c0_9 = arith.constant 0 : index
    %27 = vector.load %arg4[%c0_8, %c0_9] : memref<1x384xf32, #tpu.memory_space<vmem>>, vector<1x384xf32>
    tpu.vector_store %arg4[%c0_8, %c0_9], %26 {strides = array<i32>} : memref<1x384xf32, #tpu.memory_space<vmem>>, vector<1x384xf32>,
    return
  }
  func.func @transform_0(%arg0: i32) -> (i32, i32) {
    %c0_i32 = arith.constant 0 : i32
    %c0_i32_0 = arith.constant 0 : i32
    return %c0_i32, %arg0 : i32, i32
  }
  func.func @transform_1(%arg0: i32) -> (i32, i32) {
    %c0_i32 = arith.constant 0 : i32
    %c0_i32_0 = arith.constant 0 : i32
    %c0_i32_1 = arith.constant 0 : i32
    return %c0_i32, %c0_i32_0 : i32, i32
  }
  func.func @transform_2(%arg0: i32) -> (i32, i32) {
    %c0_i32 = arith.constant 0 : i32
    %c0_i32_0 = arith.constant 0 : i32
    %c0_i32_1 = arith.constant 0 : i32
    return %c0_i32, %c0_i32_0 : i32, i32
  }
  func.func @transform_3(%arg0: i32) -> (i32, i32) {
    %c0_i32 = arith.constant 0 : i32
    %c0_i32_0 = arith.constant 0 : i32
    return %c0_i32, %arg0 : i32, i32
  }
}

</mosaic_0001>

<llo_original>
// kernel: tpu_custom_call.1
$region0: #{tpu_custom_call.1}
  #allocation0 [shape = 'u32[]', space=smem, size = 0x4, offset = 0x4, fixed_abs, tag = 'smem constant byte address 0x4 - core index']
  #allocation1 [shape = 'u32[144,128]{1,0:T(1,128)}', space=vmem, size = 0x12000, scoped, tag = 'internal scratch']
  %s0 = inlined_call_operand.vmem [shape: f32[1,384], index: 0, kind: input, shape index: {}]
  %s1 = inlined_call_operand.vmem [shape: f32[32,8], index: 1, kind: input, shape index: {}]
  %s2 = inlined_call_operand.vmem [shape: bf16[32,32], index: 2, kind: input, shape index: {}]
  %s3 = inlined_call_operand.hbm [shape: f32[1,384], index: 3, kind: output, shape index: {}]
  %s4 = sld [smem:[#allocation0]]
  $region22: #{tpu_custom_call.1} parent=0
    _
  %s6 = ssub.s32 1, %s4
  %s7 = scalar_select 0, %s6, %s4
  $region1: #{tpu_custom_call.1} parent=0
    #allocation2 [shape = 'u8[1536]{0}', space=vmem, size = 0x800, scoped, tag = 'output window, operand 0, single buffered']
    #allocation3 [shape = 's32[1]{0}', space=sflag, size = 0x4, scoped, tag = 'scoped memory for tpu_custom_call.1']
    %8 = vsyncpa [#allocation3], 0
    // Predicated region
    $region2: #{tpu_custom_call.1} parent=1 // pred_check
      _
    $region3: #{tpu_custom_call.1} parent=1 // pred_check_branch
      %10 = sbr.rel (0) target = $region5
    $region4: #{tpu_custom_call.1} parent=1 // pred_region
      _
    $region5: #{tpu_custom_call.1} parent=1 // pred_fallthru
      _
    // Predicated region
    $region6: #{tpu_custom_call.1} parent=1 // pred_check
      _
    $region7: #{tpu_custom_call.1} parent=1 // pred_check_branch
      %12 = sbr.rel (0) target = $region9
    $region8: #{tpu_custom_call.1} parent=1 // pred_region
      _
    $region9: #{tpu_custom_call.1} parent=1 // pred_fallthru
      _
    // Predicated region
    $region10: #{tpu_custom_call.1} parent=1 // pred_check
      _
    $region11: #{tpu_custom_call.1} parent=1 // pred_check_branch
      %14 = sbr.rel (0) target = $region13
    $region12: #{tpu_custom_call.1} parent=1 // pred_region
      _
    $region13: #{tpu_custom_call.1} parent=1 // pred_fallthru
      _
    %v16 = vld [vmem:[%s0] sm:$0x7]
    %v17 = vld [vmem:[%s1] sm:$0xff]
    %v18 = vld [vmem:[%s1 + $0x8] sm:$0xff]
    %v19 = vld [vmem:[%s1 + $0x10] sm:$0xff]
    %v20 = vld [vmem:[%s1 + $0x18] sm:$0xff]
    %22 = vset.pattern.permute.xlu0 0
    %23 = vperm.xlu0 %22, %v17
    %v24 = vpop.permute.xlu0 %23
    %27 = vset.pattern.permute.xlu0 0
    %28 = vperm.xlu0 %27, %v18
    %v29 = vpop.permute.xlu0 %28
    %32 = vset.pattern.permute.xlu0 0
    %33 = vperm.xlu0 %32, %v19
    %v34 = vpop.permute.xlu0 %33
    %37 = vset.pattern.permute.xlu0 0
    %38 = vperm.xlu0 %37, %v20
    %v39 = vpop.permute.xlu0 %38
    %v42 = vlaneseq
    %v43 = vshrl.u32 %v42, 7
    %v44 = vsub.s32 0, %v43
    %v45 = vrot.slane %v16, %v44
    %v46 = vlaneseq
    %v47 = vshrl.u32 %v46, 7
    %v48 = vsub.s32 1, %v47
    %v49 = vrot.slane %v16, %v48
    %v50 = vlaneseq
    %v51 = vshrl.u32 %v50, 7
    %v52 = vsub.s32 2, %v51
    %v53 = vrot.slane %v16, %v52
    %v57 = vmul.f32 %v24, %v45
    %v58 = vmul.f32 %v24, %v49
    %v59 = vmul.f32 %v24, %v53
    %v60 = vmul.f32 %v29, %v45
    %v61 = vmul.f32 %v29, %v49
    %v62 = vmul.f32 %v29, %v53
    %v63 = vmul.f32 %v34, %v45
    %v64 = vmul.f32 %v34, %v49
    %v65 = vmul.f32 %v34, %v53
    %v66 = vmul.f32 %v39, %v45
    %v67 = vmul.f32 %v39, %v49
    %v68 = vmul.f32 %v39, %v53
    %69 = vset.pattern.permute.xlu0 1
    %70 = vperm.xlu0 %69, %v17
    %v71 = vpop.permute.xlu0 %70
    %73 = vset.pattern.permute.xlu0 1
    %74 = vperm.xlu0 %73, %v18
    %v75 = vpop.permute.xlu0 %74
    %77 = vset.pattern.permute.xlu0 1
    %78 = vperm.xlu0 %77, %v19
    %v79 = vpop.permute.xlu0 %78
    %81 = vset.pattern.permute.xlu0 1
    %82 = vperm.xlu0 %81, %v20
    %v83 = vpop.permute.xlu0 %82
    %v85 = vadd.f32 %v57, %v71
    %v86 = vadd.f32 %v58, %v71
    %v87 = vadd.f32 %v59, %v71
    %v88 = vadd.f32 %v60, %v75
    %v89 = vadd.f32 %v61, %v75
    %v90 = vadd.f32 %v62, %v75
    %v91 = vadd.f32 %v63, %v79
    %v92 = vadd.f32 %v64, %v79
    %v93 = vadd.f32 %v65, %v79
    %v94 = vadd.f32 %v66, %v83
    %v95 = vadd.f32 %v67, %v83
    %v96 = vadd.f32 %v68, %v83
    %v97 = vmax.f32 %v85, 0.0
    %v98 = vmax.f32 %v86, 0.0
    %v99 = vmax.f32 %v87, 0.0
    %v100 = vmax.f32 %v88, 0.0
    %v101 = vmax.f32 %v89, 0.0
    %v102 = vmax.f32 %v90, 0.0
    %v103 = vmax.f32 %v91, 0.0
    %v104 = vmax.f32 %v92, 0.0
    %v105 = vmax.f32 %v93, 0.0
    %v106 = vmax.f32 %v94, 0.0
    %v107 = vmax.f32 %v95, 0.0
    %v108 = vmax.f32 %v96, 0.0
    %v109 = vld [vmem:[%s2] sm:$0xf]
    %v110 = vld [vmem:[%s2 + $0x4] sm:$0xf]
    %v111 = vld [vmem:[%s2 + $0x8] sm:$0xf]
    %v112 = vld [vmem:[%s2 + $0xc] sm:$0xf]
    %v113 = vpack.c.bf16 %v100, %v97
    %v114 = vpack.c.bf16 %v101, %v98
    %v115 = vpack.c.bf16 %v102, %v99
    %v116 = vpack.c.bf16 %v106, %v103
    %v117 = vpack.c.bf16 %v107, %v104
    %v118 = vpack.c.bf16 %v108, %v105
    %119 = vset.pattern.permute.xlu0 2
    %120 = vperm.xlu0 %119, %v17
    %v121 = vpop.permute.xlu0 %120
    %123 = vset.pattern.permute.xlu0 2
    %124 = vperm.xlu0 %123, %v18
    %v125 = vpop.permute.xlu0 %124
    %127 = vset.pattern.permute.xlu0 2
    %128 = vperm.xlu0 %127, %v19
    %v129 = vpop.permute.xlu0 %128
    %131 = vset.pattern.permute.xlu0 2
    %132 = vperm.xlu0 %131, %v20
    %v133 = vpop.permute.xlu0 %132
    %v139 = vunpack.c.l.b16 %v109
    %v140 = vunpack.c.l.b16 %v110
    %v141 = vunpack.c.l.b16 %v111
    %v142 = vunpack.c.l.b16 %v112
    %v143 = vpack.c.b16 %v140, %v139
    %v144 = vpack.c.b16 %v142, %v141
    %vm145 = vcmask 261120
    %v147 = vsel %vm145, %v143, 0
    %v150 = vsel %vm145, %v144, 0
    %152 = vmatprep.subr.bf16.mxu0 %v114
    %153 = vmatpush1.bf16.msra.mxu0 %v113
    %154 = vmatprep.subr.bf16.mxu0 %v117
    %155 = vmatpush1.bf16.msra.mxu0 %v116
    %156 = vmatprep.subr.bf16.mxu0 0
    %157 = vmatpush1.bf16.msra.mxu0 0
    %158 = vmatprep.subr.bf16.mxu0 0
    %159 = vmatpush1.bf16.msra.mxu0 0
    %160 = vmatprep.subr.bf16.mxu0 0
    %161 = vmatpush1.bf16.msra.mxu0 0
    %162 = vmatprep.subr.bf16.mxu0 0
    %163 = vmatpush1.bf16.msra.mxu0 0
    %164 = vmatprep.subr.bf16.mxu0 0
    %165 = vmatpush1.bf16.msra.mxu0 0
    %166 = vmatprep.subr.bf16.mxu0 0
    %167 = vmatpush1.bf16.msra.mxu0 0
    %168 = vmatprep.subr.bf16.mxu0 0
    %169 = vmatpush1.bf16.msra.mxu0 0
    %170 = vmatprep.subr.bf16.mxu0 0
    %171 = vmatpush1.bf16.msra.mxu0 0
    %172 = vmatprep.subr.bf16.mxu0 0
    %173 = vmatpush1.bf16.msra.mxu0 0
    %174 = vmatprep.subr.bf16.mxu0 0
    %175 = vmatpush1.bf16.msra.mxu0 0
    %176 = vmatprep.subr.bf16.mxu0 0
    %177 = vmatpush1.bf16.msra.mxu0 0
    %178 = vmatprep.subr.bf16.mxu0 0
    %179 = vmatpush1.bf16.msra.mxu0 0
    %180 = vmatprep.subr.bf16.mxu0 0
    %181 = vmatpush1.bf16.msra.mxu0 0
    %182 = vmatprep.subr.bf16.mxu0 0
    %183 = vmatpush1.bf16.msra.mxu0 0
    %184 = vmatprep.mubr.bf16.mxu0 0
    %185 = vmatmul.mubr.bf16.gmra.mrb[0].mxu0 %v147
    %v186 = vpop.f32.mrb[0].mxu0
    %v187 = vadd.f32 %v121, %v186
    %v188 = vpop.f32.mrb[0].mxu0
    %v189 = vadd.f32 %v121, %v188
    %v190 = vpop.f32.mrb[0].mxu0
    %v191 = vadd.f32 %v125, %v190
    %v192 = vpop.f32.mrb[0].mxu0
    %v193 = vadd.f32 %v125, %v192
    %194 = vmatprep.mubr.bf16.mxu0 0
    %195 = vmatmul.mubr.bf16.gmra.mrb[0].mxu0 %v150
    %v196 = vpop.f32.mrb[0].mxu0
    %v197 = vadd.f32 %v129, %v196
    %v198 = vpop.f32.mrb[0].mxu0
    %v199 = vadd.f32 %v129, %v198
    %v200 = vpop.f32.mrb[0].mxu0
    %v201 = vadd.f32 %v133, %v200
    %v202 = vpop.f32.mrb[0].mxu0
    %v203 = vadd.f32 %v133, %v202
    %204 = vdwg.mxu0
    %205 = vmatprep.subr.bf16.mxu0 0
    %206 = vmatpush1.bf16.msra.mxu0 %v115
    %207 = vmatprep.subr.bf16.mxu0 0
    %208 = vmatpush1.bf16.msra.mxu0 %v118
    %209 = vmatprep.subr.bf16.mxu0 0
    %210 = vmatpush1.bf16.msra.mxu0 0
    %211 = vmatprep.subr.bf16.mxu0 0
    %212 = vmatpush1.bf16.msra.mxu0 0
    %213 = vmatprep.subr.bf16.mxu0 0
    %214 = vmatpush1.bf16.msra.mxu0 0
    %215 = vmatprep.subr.bf16.mxu0 0
    %216 = vmatpush1.bf16.msra.mxu0 0
    %217 = vmatprep.subr.bf16.mxu0 0
    %218 = vmatpush1.bf16.msra.mxu0 0
    %219 = vmatprep.subr.bf16.mxu0 0
    %220 = vmatpush1.bf16.msra.mxu0 0
    %221 = vmatprep.subr.bf16.mxu0 0
    %222 = vmatpush1.bf16.msra.mxu0 0
    %223 = vmatprep.subr.bf16.mxu0 0
    %224 = vmatpush1.bf16.msra.mxu0 0
    %225 = vmatprep.subr.bf16.mxu0 0
    %226 = vmatpush1.bf16.msra.mxu0 0
    %227 = vmatprep.subr.bf16.mxu0 0
    %228 = vmatpush1.bf16.msra.mxu0 0
    %229 = vmatprep.subr.bf16.mxu0 0
    %230 = vmatpush1.bf16.msra.mxu0 0
    %231 = vmatprep.subr.bf16.mxu0 0
    %232 = vmatpush1.bf16.msra.mxu0 0
    %233 = vmatprep.subr.bf16.mxu0 0
    %234 = vmatpush1.bf16.msra.mxu0 0
    %235 = vmatprep.subr.bf16.mxu0 0
    %236 = vmatpush1.bf16.msra.mxu0 0
    %237 = vmatprep.mubr.bf16.mxu0 0
    %238 = vmatmul.mubr.bf16.gmra.mrb[0].mxu0 %v147
    %v239 = vpop.f32.mrb[0].mxu0
    %v240 = vadd.f32 %v121, %v239
    %v241 = vpop.f32.mrb[0].mxu0
    %v242 = vpop.f32.mrb[0].mxu0
    %v243 = vadd.f32 %v125, %v242
    %v244 = vpop.f32.mrb[0].mxu0
    %245 = vmatprep.mubr.bf16.mxu0 0
    %246 = vmatmul.mubr.bf16.gmra.mrb[0].mxu0 %v150
    %v247 = vpop.f32.mrb[0].mxu0
    %v248 = vadd.f32 %v129, %v247
    %v249 = vpop.f32.mrb[0].mxu0
    %v250 = vpop.f32.mrb[0].mxu0
    %v251 = vadd.f32 %v133, %v250
    %v252 = vpop.f32.mrb[0].mxu0
    %253 = vdwg.mxu0
    %v254 = vmax.f32 %v187, 0.0
    %v255 = vmax.f32 %v189, 0.0
    %v256 = vmax.f32 %v240, 0.0
    %v257 = vmax.f32 %v191, 0.0
    %v258 = vmax.f32 %v193, 0.0
    %v259 = vmax.f32 %v243, 0.0
    %v260 = vmax.f32 %v197, 0.0
    %v261 = vmax.f32 %v199, 0.0
    %v262 = vmax.f32 %v248, 0.0
    %v263 = vmax.f32 %v201, 0.0
    %v264 = vmax.f32 %v203, 0.0
    %v265 = vmax.f32 %v251, 0.0
    %266 = vset.pattern.permute.xlu0 3
    %267 = vperm.xlu0 %266, %v17
    %v268 = vpop.permute.xlu0 %267
    %270 = vset.pattern.permute.xlu0 3
    %271 = vperm.xlu0 %270, %v18
    %v272 = vpop.permute.xlu0 %271
    %274 = vset.pattern.permute.xlu0 3
    %275 = vperm.xlu0 %274, %v19
    %v276 = vpop.permute.xlu0 %275
    %278 = vset.pattern.permute.xlu0 3
    %279 = vperm.xlu0 %278, %v20
    %v280 = vpop.permute.xlu0 %279
    %v282 = vmul.f32 %v268, %v254
    %v283 = vmul.f32 %v268, %v255
    %v284 = vmul.f32 %v268, %v256
    %v285 = vmul.f32 %v272, %v257
    %v286 = vmul.f32 %v272, %v258
    %v287 = vmul.f32 %v272, %v259
    %v288 = vmul.f32 %v276, %v260
    %v289 = vmul.f32 %v276, %v261
    %v290 = vmul.f32 %v276, %v262
    %v291 = vmul.f32 %v280, %v263
    %v292 = vmul.f32 %v280, %v264
    %v293 = vmul.f32 %v280, %v265
    %v294 = vadd.f32 %v282, %v285
    %v295 = vadd.f32 %v294, %v288
    %v296 = vadd.f32 %v295, %v291
    %v297 = vrot.slane %v296, 4
    %v298 = vadd.f32 %v296, %v297
    %v299 = vrot.slane %v298, 2
    %v300 = vadd.f32 %v298, %v299
    %v301 = vrot.slane %v300, 1
    %v302 = vadd.f32 %v300, %v301
    %v303 = vadd.f32 %v283, %v286
    %v304 = vadd.f32 %v303, %v289
    %v305 = vadd.f32 %v304, %v292
    %v306 = vrot.slane %v305, 4
    %v307 = vadd.f32 %v305, %v306
    %v308 = vrot.slane %v307, 2
    %v309 = vadd.f32 %v307, %v308
    %v310 = vrot.slane %v309, 1
    %v311 = vadd.f32 %v309, %v310
    %v312 = vadd.f32 %v284, %v287
    %v313 = vadd.f32 %v312, %v290
    %v314 = vadd.f32 %v313, %v293
    %v315 = vrot.slane %v314, 4
    %v316 = vadd.f32 %v314, %v315
    %v317 = vrot.slane %v316, 2
    %v318 = vadd.f32 %v316, %v317
    %v319 = vrot.slane %v318, 1
    %v320 = vadd.f32 %v318, %v319
    %321 = vset.pattern.permute.xlu0 4
    %322 = vperm.xlu0 %321, %v17
    %v323 = vpop.permute.xlu0 %322
    %v325 = vadd.f32 %v302, %v323
    %v326 = vadd.f32 %v311, %v323
    %v327 = vadd.f32 %v320, %v323
    %v331 = vcombine.low %v325, %v326
    %v333 = vunpack.c.l.s4 1966171168
    %v334 = vunpack.c.0.s8 %v333
    %v335 = vlaneseq
    %v336 = vshrl.u32 %v335, 7
    %v337 = vsub.s32 %v334, %v336
    %v338 = vrot.slane %v331, %v337
    %v340 = vunpack.c.l.s4 1966171168
    %v341 = vunpack.c.0.s8 %v340
    %v342 = vlaneseq
    %v343 = vshrl.u32 %v342, 7
    %v344 = vsub.s32 %v341, %v343
    %v345 = vrot.slane %v327, %v344
    %v346 = vcombine.low %v338, %v345
    %v348 = vunpack.c.l.s4 1966171168
    %v349 = vunpack.c.0.s8 %v348
    %v350 = vlaneseq
    %v351 = vshrl.u32 %v350, 7
    %v352 = vsub.s32 %v349, %v351
    %v353 = vrot.slane %v346, %v352
    %v355 = vlaneseq
    %vm356 = vcmp.ge.s32.totalorder %v355, 0
    %vm357 = vcmp.lt.s32.totalorder %v355, 384
    %vm358 = vmand %vm356, %vm357
    %359 = vst.msk [vmem:[#allocation2] sm:$0x7] %vm358, %v353
    // Predicated region
    $region14: #{tpu_custom_call.1} parent=1 // pred_check
      _
    $region15: #{tpu_custom_call.1} parent=1 // pred_check_branch
      %361 = sbr.rel (0) target = $region17
    $region16: #{tpu_custom_call.1} parent=1 // pred_region
      %s363 = ssub.s32 48, 48
      %364 = vsyncadd [#allocation3], %s363
      %s366 = sshll.u32 [#allocation2], 4
      %s367 = int_to_ptr.vmem [resolvable:$true] %s366
      %369 = dma.vmem_to_hbm [thread:$0]  %s367, 48, %s3, [#allocation3]
    $region17: #{tpu_custom_call.1} parent=1 // pred_fallthru
      _
    // Predicated region
    $region18: #{tpu_custom_call.1} parent=1 // pred_check
      _
    $region19: #{tpu_custom_call.1} parent=1 // pred_check_branch
      %371 = sbr.rel (0) target = $region21
    $region20: #{tpu_custom_call.1} parent=1 // pred_region
      %372 = dma.done [#allocation3], 48
    $region21: #{tpu_custom_call.1} parent=1 // pred_fallthru
      _
    %373 = vsyncpa [#allocation3], 1

</llo_original>
